<compile_context>
chip_gen: v7x
topology: tpu7x:2x2x1
jax: 0.10.0
libtpu: 0.0.40
codegen_flags: <defaults>
</compile_context>

<pallas_src>
import functools

import jax
import jax.numpy as jnp
from jax.experimental import pallas as pl
from jax.experimental.pallas import tpu as pltpu

LANES = 128


def _round_up(n, m):
    return (n + m - 1) // m * m


# ---------------------------------------------------------------------------
# In-kernel math helpers (traced into the Pallas kernel body)
# ---------------------------------------------------------------------------
def _mish(x):
    # mish(x) = x * tanh(softplus(x));  tanh(log u) = (u^2-1)/(u^2+1), u = 1+e^x.
    # One exp + one approx reciprocal instead of exp + log1p + tanh.
    xs = jnp.minimum(x, 20.0)                 # overflow guard (torch threshold)
    u = 1.0 + jnp.exp(xs)
    u2 = u * u
    t = (u2 - 1.0) * pl.reciprocal(u2 + 1.0, approx=True)
    t = jnp.where(x > 20.0, 1.0, t)           # softplus(x)~x, tanh(x>20)~1
    return x * t


def _sigmoid(x):
    e = jnp.exp(jnp.minimum(-x, 30.0))        # clamp avoids inf into approx recip
    return pl.reciprocal(1.0 + e, approx=True)


def _batchnorm_train(x, gamma, beta, eps=1e-5):
    # BatchNorm1d in training mode: batch mean, biased variance, one pass.
    mean = jnp.mean(x, axis=0, keepdims=True)
    mean_sq = jnp.mean(x * x, axis=0, keepdims=True)
    var = jnp.maximum(mean_sq - mean * mean, 0.0)
    return (x - mean) * jax.lax.rsqrt(var + eps) * gamma + beta


# ---------------------------------------------------------------------------
# The Pallas kernel: full VAE forward pass (grid-less, whole batch resident)
# ---------------------------------------------------------------------------
def _vae_kernel(data_ref, wenc_ref, wdec_ref, vec_ref, out_ref, *, latent_dim, pf):
    f32 = jnp.float32

    def vec(i):                               # (1, PF) row of the packed vector slab
        return vec_ref[i:i + 1, :]

    x = data_ref[:, 0:pf]                     # padded input rows (real cols < input_dim)
    eps = data_ref[:, pf:pf + latent_dim]     # (B, latent) reparam noise

    # ---- Encoder ----
    h = jnp.dot(x, wenc_ref[0], preferred_element_type=f32) + vec(0)
    h = _mish(_batchnorm_train(h, vec(1), vec(2)))
    h = jnp.dot(h, wenc_ref[1], preferred_element_type=f32) + vec(3)
    h = _mish(_batchnorm_train(h, vec(4), vec(5)))

    # Fused fc_mu || fc_logvar projection: lanes [0,L) = mu, [L,2L) = logvar.
    mulv = jnp.dot(h, wenc_ref[2], preferred_element_type=f32) + vec(6)

    # ---- Reparameterize (noise_parameter = 0.0) ----
    mu = mulv[:, 0:latent_dim]
    logvar = mulv[:, latent_dim:2 * latent_dim]
    z = mu + eps * jnp.exp(0.5 * logvar)      # (B, latent)

    # ---- Decoder ----
    d = jnp.dot(z, wdec_ref[0, :latent_dim, :], preferred_element_type=f32) + vec(7)
    d = _mish(_batchnorm_train(d, vec(8), vec(9)))
    d = jnp.dot(d, wdec_ref[1], preferred_element_type=f32) + vec(10)
    d = _mish(_batchnorm_train(d, vec(11), vec(12)))
    d = jnp.dot(d, wdec_ref[2], preferred_element_type=f32) + vec(13)

    # Single lane-dense output slab: [0,PF) = x_recon (padded), [PF,2PF) = mu||logvar.
    out_ref[:, 0:pf] = _sigmoid(d)
    out_ref[:, pf:2 * pf] = mulv


# ---------------------------------------------------------------------------
# Parameter packing (done once, outside the hot path)
# ---------------------------------------------------------------------------
def pack_params(params, input_dim, hidden_dim, latent_dim):
    (w0, b0, g0, be0,
     w1, b1, g1, be1,
     wmu, bmu, wlv, blv,
     d0, db0, dg0, dbe0,
     d1, db1, dg1, dbe1,
     d2, db2) = params

    pf = _round_up(max(input_dim, hidden_dim, 2 * latent_dim), LANES)

    def pad_w(w):
        return jnp.pad(w, ((0, pf - w.shape[0]), (0, pf - w.shape[1])))

    def pad_v(v):
        v = jnp.asarray(v).reshape(1, -1)
        return jnp.pad(v, ((0, 0), (0, pf - v.shape[1])))

    wmulv = jnp.concatenate([wmu, wlv], axis=1)                        # (H, 2L)
    bmulv = jnp.concatenate([bmu.reshape(1, -1), blv.reshape(1, -1)], axis=1)

    wenc = jnp.stack([pad_w(w0), pad_w(w1), pad_w(wmulv)])             # (3, PF, PF)
    wdec = jnp.stack([pad_w(d0), pad_w(d1), pad_w(d2)])                # (3, PF, PF)

    rows = [b0, g0, be0, b1, g1, be1, bmulv,
            db0, dg0, dbe0, db1, dg1, dbe1, db2]
    vecs = jnp.concatenate([pad_v(v) for v in rows], axis=0)           # (14, PF)
    n_rows = _round_up(vecs.shape[0], 8)
    vecs = jnp.pad(vecs, ((0, n_rows - vecs.shape[0]), (0, 0)))        # (16, PF)
    return wenc, wdec, vecs


# ---------------------------------------------------------------------------
# Wrapper
# ---------------------------------------------------------------------------
@jax.jit
def vae_forward(x, eps, wenc, wdec, vecs):
    """VAE forward pass in a single Pallas kernel.

    x:    (B, input_dim) f32        eps: (B, latent_dim) f32 standard normal
    wenc/wdec/vecs: packed parameter slabs from pack_params().
    Returns (x_recon, mu, logvar).
    """
    batch, input_dim = x.shape
    latent_dim = eps.shape[1]
    pf = wenc.shape[-1]

    # One lane-dense input slab: [0,ID) = x, [PF,PF+L) = eps, zeros elsewhere.
    data = jnp.concatenate(
        [jnp.pad(x, ((0, 0), (0, pf - input_dim))),
         jnp.pad(eps, ((0, 0), (0, pf - latent_dim)))], axis=1)

    kernel = functools.partial(_vae_kernel, latent_dim=latent_dim, pf=pf)
    vmem = pl.BlockSpec(memory_space=pltpu.MemorySpace.VMEM)

    out = pl.pallas_call(
        kernel,
        out_shape=jax.ShapeDtypeStruct((batch, 2 * pf), jnp.float32),
        in_specs=[vmem, vmem, vmem, vmem],
        out_specs=vmem,
        compiler_params=pltpu.CompilerParams(vmem_limit_bytes=16 * 1024 * 1024),
    )(data, wenc, wdec, vecs)

    x_recon = out[:, :input_dim]                     # drop sigmoid(0)=0.5 pad lanes
    mu = out[:, pf:pf + latent_dim]
    logvar = out[:, pf + latent_dim:pf + 2 * latent_dim]
    return x_recon, mu, logvar


# ---------------------------------------------------------------------------
# Deterministic parameter construction (flat geometry, n_layers=3)
# ---------------------------------------------------------------------------
def make_params(key, input_dim, hidden_dim, latent_dim):
    """(in_dim, out_dim) weights, (1, out_dim) biases, BN gamma/beta."""
    def linear(k, in_d, out_d):
        kw, kb = jax.random.split(k)
        bound = 1.0 / jnp.sqrt(jnp.float32(in_d))
        w = jax.random.uniform(kw, (in_d, out_d), jnp.float32, -bound, bound)
        b = jax.random.uniform(kb, (1, out_d), jnp.float32, -bound, bound)
        return w, b

    def bn(out_d):
        return jnp.ones((1, out_d), jnp.float32), jnp.zeros((1, out_d), jnp.float32)

    keys = jax.random.split(key, 7)
    w0, b0 = linear(keys[0], input_dim, hidden_dim)
    g0, be0 = bn(hidden_dim)
    w1, b1 = linear(keys[1], hidden_dim, hidden_dim)
    g1, be1 = bn(hidden_dim)
    wmu, bmu = linear(keys[2], hidden_dim, latent_dim)
    wlv, blv = linear(keys[3], hidden_dim, latent_dim)
    d0, db0 = linear(keys[4], latent_dim, hidden_dim)
    dg0, dbe0 = bn(hidden_dim)
    d1, db1 = linear(keys[5], hidden_dim, hidden_dim)
    dg1, dbe1 = bn(hidden_dim)
    d2, db2 = linear(keys[6], hidden_dim, input_dim)
    return (w0, b0, g0, be0, w1, b1, g1, be1, wmu, bmu, wlv, blv,
            d0, db0, dg0, dbe0, d1, db1, dg1, dbe1, d2, db2)


# ---------------------------------------------------------------------------
# Pure-JAX reference (exact math) for numerical validation
# ---------------------------------------------------------------------------
def vae_reference(x, eps, params):
    (w0, b0, g0, be0, w1, b1, g1, be1, wmu, bmu, wlv, blv,
     d0, db0, dg0, dbe0, d1, db1, dg1, dbe1, d2, db2) = params

    def bn(h, g, b, e=1e-5):
        m = jnp.mean(h, axis=0, keepdims=True)
        v = jnp.mean((h - m) ** 2, axis=0, keepdims=True)
        return (h - m) / jnp.sqrt(v + e) * g + b

    def mish(h):
        return h * jnp.tanh(jax.nn.softplus(h))

    h = mish(bn(x @ w0 + b0, g0, be0))
    h = mish(bn(h @ w1 + b1, g1, be1))
    mu = h @ wmu + bmu
    logvar = h @ wlv + blv
    z = mu + eps * jnp.exp(0.5 * logvar)
    d = mish(bn(z @ d0 + db0, dg0, dbe0))
    d = mish(bn(d @ d1 + db1, dg1, dbe1))
    xr = jax.nn.sigmoid(d @ d2 + db2)
    return xr, mu, logvar


if __name__ == "__main__":
    # Small, module-consistent shapes: VAE(latent_dim=8, hidden_dim=32, input_dim=64)
    batch, input_dim, hidden_dim, latent_dim = 8, 64, 32, 8

    key = jax.random.PRNGKey(0)
    kx, keps, kparams = jax.random.split(key, 3)

    x = jax.random.uniform(kx, (batch, input_dim), jnp.float32)
    eps = jax.random.normal(keps, (batch, latent_dim), jnp.float32)
    params = make_params(kparams, input_dim, hidden_dim, latent_dim)
    wenc, wdec, vecs = pack_params(params, input_dim, hidden_dim, latent_dim)

    x_recon, mu, logvar = vae_forward(x, eps, wenc, wdec, vecs)
    jax.block_until_ready((x_recon, mu, logvar))

    assert x_recon.shape == (batch, input_dim)
    assert mu.shape == (batch, latent_dim)
    assert logvar.shape == (batch, latent_dim)
    assert bool(jnp.all(jnp.isfinite(x_recon)))

    xr_ref, mu_ref, lv_ref = vae_reference(x, eps, params)
    assert bool(jnp.allclose(mu, mu_ref, atol=1e-2, rtol=1e-2))
    assert bool(jnp.allclose(logvar, lv_ref, atol=1e-2, rtol=1e-2))
    assert bool(jnp.allclose(x_recon, xr_ref, atol=1e-2, rtol=1e-2))

    print("KERNEL_OK")
</pallas_src>

<mosaic_0001>
module attributes {stable_mosaic.version = 11 : i64} {
  func.func @_vae_kernel(%arg0: memref<8x256xf32, #tpu.memory_space<vmem>>, %arg1: memref<3x128x128xf32, #tpu.memory_space<vmem>>, %arg2: memref<3x128x128xf32, #tpu.memory_space<vmem>>, %arg3: memref<16x128xf32, #tpu.memory_space<vmem>>, %arg4: memref<8x256xf32, #tpu.memory_space<vmem>>) attributes {dimension_semantics = [], scalar_prefetch = 0 : i64, scratch_operands = 0 : i64, tpu.core_type = #tpu.core_type<tc>} {
    %c0 = arith.constant 0 : index
    %c0_0 = arith.constant 0 : index
    %0 = vector.load %arg0[%c0, %c0_0] : memref<8x256xf32, #tpu.memory_space<vmem>>, vector<8x128xf32>
    %c0_1 = arith.constant 0 : index
    %c128 = arith.constant 128 : index
    %1 = vector.load %arg0[%c0_1, %c128] : memref<8x256xf32, #tpu.memory_space<vmem>>, vector<8x8xf32>
    %c0_2 = arith.constant 0 : index
    %c0_3 = arith.constant 0 : index
    %c0_4 = arith.constant 0 : index
    %2 = vector.load %arg1[%c0_2, %c0_3, %c0_4] : memref<3x128x128xf32, #tpu.memory_space<vmem>>, vector<1x128x128xf32>
    %3 = vector.shape_cast %2 : vector<1x128x128xf32> to vector<128x128xf32>
    %cst = arith.constant dense<0.000000e+00> : vector<8x128xf32>
    %4 = tpu.matmul %0, %3, %cst {dimension_numbers = #tpu.dot_dimension_numbers<[1], [0], [0], [1], [0, 0, 1, 1], [], []>} : vector<8x128xf32>, vector<128x128xf32>, vector<8x128xf32> -> vector<8x128xf32>
    %c0_5 = arith.constant 0 : index
    %c0_6 = arith.constant 0 : index
    %5 = vector.load %arg3[%c0_5, %c0_6] : memref<16x128xf32, #tpu.memory_space<vmem>>, vector<1x128xf32>
    %6 = vector.broadcast %5 : vector<1x128xf32> to vector<8x128xf32>
    %7 = arith.addf %4, %6 : vector<8x128xf32>
    %c1 = arith.constant 1 : index
    %c0_7 = arith.constant 0 : index
    %8 = vector.load %arg3[%c1, %c0_7] : memref<16x128xf32, #tpu.memory_space<vmem>>, vector<1x128xf32>
    %c2 = arith.constant 2 : index
    %c0_8 = arith.constant 0 : index
    %9 = vector.load %arg3[%c2, %c0_8] : memref<16x128xf32, #tpu.memory_space<vmem>>, vector<1x128xf32>
    %cst_9 = arith.constant dense<0.000000e+00> : vector<128xf32>
    %10 = vector.multi_reduction <add>, %7, %cst_9 [0] : vector<8x128xf32> to vector<128xf32>
    %11 = vector.shape_cast %10 : vector<128xf32> to vector<1x128xf32>
    %cst_10 = arith.constant 8.000000e+00 : f32
    %12 = vector.broadcast %cst_10 : f32 to vector<1x128xf32>
    %13 = arith.divf %11, %12 : vector<1x128xf32>
    %14 = arith.mulf %7, %7 : vector<8x128xf32>
    %cst_11 = arith.constant dense<0.000000e+00> : vector<128xf32>
    %15 = vector.multi_reduction <add>, %14, %cst_11 [0] : vector<8x128xf32> to vector<128xf32>
    %16 = vector.shape_cast %15 : vector<128xf32> to vector<1x128xf32>
    %cst_12 = arith.constant 8.000000e+00 : f32
    %17 = vector.broadcast %cst_12 : f32 to vector<1x128xf32>
    %18 = arith.divf %16, %17 : vector<1x128xf32>
    %19 = arith.mulf %13, %13 : vector<1x128xf32>
    %20 = arith.subf %18, %19 : vector<1x128xf32>
    %cst_13 = arith.constant 0.000000e+00 : f32
    %21 = vector.broadcast %cst_13 : f32 to vector<1x128xf32>
    %22 = arith.maximumf %20, %21 : vector<1x128xf32>
    %23 = vector.broadcast %13 : vector<1x128xf32> to vector<8x128xf32>
    %24 = arith.subf %7, %23 : vector<8x128xf32>
    %cst_14 = arith.constant 9.99999974E-6 : f32
    %25 = vector.broadcast %cst_14 : f32 to vector<1x128xf32>
    %26 = arith.addf %22, %25 : vector<1x128xf32>
    %27 = math.rsqrt %26 : vector<1x128xf32>
    %28 = vector.broadcast %27 : vector<1x128xf32> to vector<8x128xf32>
    %29 = arith.mulf %24, %28 : vector<8x128xf32>
    %30 = vector.broadcast %8 : vector<1x128xf32> to vector<8x128xf32>
    %31 = arith.mulf %29, %30 : vector<8x128xf32>
    %32 = vector.broadcast %9 : vector<1x128xf32> to vector<8x128xf32>
    %33 = arith.addf %31, %32 : vector<8x128xf32>
    %cst_15 = arith.constant 2.000000e+01 : f32
    %34 = vector.broadcast %cst_15 : f32 to vector<8x128xf32>
    %35 = arith.minimumf %33, %34 : vector<8x128xf32>
    %36 = math.exp %35 : vector<8x128xf32>
    %cst_16 = arith.constant 1.000000e+00 : f32
    %37 = vector.broadcast %cst_16 : f32 to vector<8x128xf32>
    %38 = arith.addf %37, %36 : vector<8x128xf32>
    %39 = arith.mulf %38, %38 : vector<8x128xf32>
    %cst_17 = arith.constant 1.000000e+00 : f32
    %40 = vector.broadcast %cst_17 : f32 to vector<8x128xf32>
    %41 = arith.subf %39, %40 : vector<8x128xf32>
    %cst_18 = arith.constant 1.000000e+00 : f32
    %42 = vector.broadcast %cst_18 : f32 to vector<8x128xf32>
    %43 = arith.addf %39, %42 : vector<8x128xf32>
    %44 = tpu.reciprocal %43 {approx = true} : vector<8x128xf32> -> vector<8x128xf32>
    %45 = arith.mulf %41, %44 : vector<8x128xf32>
    %cst_19 = arith.constant 2.000000e+01 : f32
    %46 = vector.broadcast %cst_19 : f32 to vector<8x128xf32>
    %47 = arith.cmpf ogt, %33, %46 : vector<8x128xf32>
    %cst_20 = arith.constant 1.000000e+00 : f32
    %48 = vector.broadcast %cst_20 : f32 to vector<8x128xf32>
    %49 = arith.select %47, %48, %45 : vector<8x128xi1>, vector<8x128xf32>
    %50 = arith.mulf %33, %49 : vector<8x128xf32>
    %c1_21 = arith.constant 1 : index
    %c0_22 = arith.constant 0 : index
    %c0_23 = arith.constant 0 : index
    %51 = vector.load %arg1[%c1_21, %c0_22, %c0_23] : memref<3x128x128xf32, #tpu.memory_space<vmem>>, vector<1x128x128xf32>
    %52 = vector.shape_cast %51 : vector<1x128x128xf32> to vector<128x128xf32>
    %cst_24 = arith.constant dense<0.000000e+00> : vector<8x128xf32>
    %53 = tpu.matmul %50, %52, %cst_24 {dimension_numbers = #tpu.dot_dimension_numbers<[1], [0], [0], [1], [0, 0, 1, 1], [], []>} : vector<8x128xf32>, vector<128x128xf32>, vector<8x128xf32> -> vector<8x128xf32>
    %c3 = arith.constant 3 : index
    %c0_25 = arith.constant 0 : index
    %54 = vector.load %arg3[%c3, %c0_25] : memref<16x128xf32, #tpu.memory_space<vmem>>, vector<1x128xf32>
    %55 = vector.broadcast %54 : vector<1x128xf32> to vector<8x128xf32>
    %56 = arith.addf %53, %55 : vector<8x128xf32>
    %c4 = arith.constant 4 : index
    %c0_26 = arith.constant 0 : index
    %57 = vector.load %arg3[%c4, %c0_26] : memref<16x128xf32, #tpu.memory_space<vmem>>, vector<1x128xf32>
    %c5 = arith.constant 5 : index
    %c0_27 = arith.constant 0 : index
    %58 = vector.load %arg3[%c5, %c0_27] : memref<16x128xf32, #tpu.memory_space<vmem>>, vector<1x128xf32>
    %cst_28 = arith.constant dense<0.000000e+00> : vector<128xf32>
    %59 = vector.multi_reduction <add>, %56, %cst_28 [0] : vector<8x128xf32> to vector<128xf32>
    %60 = vector.shape_cast %59 : vector<128xf32> to vector<1x128xf32>
    %cst_29 = arith.constant 8.000000e+00 : f32
    %61 = vector.broadcast %cst_29 : f32 to vector<1x128xf32>
    %62 = arith.divf %60, %61 : vector<1x128xf32>
    %63 = arith.mulf %56, %56 : vector<8x128xf32>
    %cst_30 = arith.constant dense<0.000000e+00> : vector<128xf32>
    %64 = vector.multi_reduction <add>, %63, %cst_30 [0] : vector<8x128xf32> to vector<128xf32>
    %65 = vector.shape_cast %64 : vector<128xf32> to vector<1x128xf32>
    %cst_31 = arith.constant 8.000000e+00 : f32
    %66 = vector.broadcast %cst_31 : f32 to vector<1x128xf32>
    %67 = arith.divf %65, %66 : vector<1x128xf32>
    %68 = arith.mulf %62, %62 : vector<1x128xf32>
    %69 = arith.subf %67, %68 : vector<1x128xf32>
    %cst_32 = arith.constant 0.000000e+00 : f32
    %70 = vector.broadcast %cst_32 : f32 to vector<1x128xf32>
    %71 = arith.maximumf %69, %70 : vector<1x128xf32>
    %72 = vector.broadcast %62 : vector<1x128xf32> to vector<8x128xf32>
    %73 = arith.subf %56, %72 : vector<8x128xf32>
    %cst_33 = arith.constant 9.99999974E-6 : f32
    %74 = vector.broadcast %cst_33 : f32 to vector<1x128xf32>
    %75 = arith.addf %71, %74 : vector<1x128xf32>
    %76 = math.rsqrt %75 : vector<1x128xf32>
    %77 = vector.broadcast %76 : vector<1x128xf32> to vector<8x128xf32>
    %78 = arith.mulf %73, %77 : vector<8x128xf32>
    %79 = vector.broadcast %57 : vector<1x128xf32> to vector<8x128xf32>
    %80 = arith.mulf %78, %79 : vector<8x128xf32>
    %81 = vector.broadcast %58 : vector<1x128xf32> to vector<8x128xf32>
    %82 = arith.addf %80, %81 : vector<8x128xf32>
    %cst_34 = arith.constant 2.000000e+01 : f32
    %83 = vector.broadcast %cst_34 : f32 to vector<8x128xf32>
    %84 = arith.minimumf %82, %83 : vector<8x128xf32>
    %85 = math.exp %84 : vector<8x128xf32>
    %cst_35 = arith.constant 1.000000e+00 : f32
    %86 = vector.broadcast %cst_35 : f32 to vector<8x128xf32>
    %87 = arith.addf %86, %85 : vector<8x128xf32>
    %88 = arith.mulf %87, %87 : vector<8x128xf32>
    %cst_36 = arith.constant 1.000000e+00 : f32
    %89 = vector.broadcast %cst_36 : f32 to vector<8x128xf32>
    %90 = arith.subf %88, %89 : vector<8x128xf32>
    %cst_37 = arith.constant 1.000000e+00 : f32
    %91 = vector.broadcast %cst_37 : f32 to vector<8x128xf32>
    %92 = arith.addf %88, %91 : vector<8x128xf32>
    %93 = tpu.reciprocal %92 {approx = true} : vector<8x128xf32> -> vector<8x128xf32>
    %94 = arith.mulf %90, %93 : vector<8x128xf32>
    %cst_38 = arith.constant 2.000000e+01 : f32
    %95 = vector.broadcast %cst_38 : f32 to vector<8x128xf32>
    %96 = arith.cmpf ogt, %82, %95 : vector<8x128xf32>
    %cst_39 = arith.constant 1.000000e+00 : f32
    %97 = vector.broadcast %cst_39 : f32 to vector<8x128xf32>
    %98 = arith.select %96, %97, %94 : vector<8x128xi1>, vector<8x128xf32>
    %99 = arith.mulf %82, %98 : vector<8x128xf32>
    %c2_40 = arith.constant 2 : index
    %c0_41 = arith.constant 0 : index
    %c0_42 = arith.constant 0 : index
    %100 = vector.load %arg1[%c2_40, %c0_41, %c0_42] : memref<3x128x128xf32, #tpu.memory_space<vmem>>, vector<1x128x128xf32>
    %101 = vector.shape_cast %100 : vector<1x128x128xf32> to vector<128x128xf32>
    %cst_43 = arith.constant dense<0.000000e+00> : vector<8x128xf32>
    %102 = tpu.matmul %99, %101, %cst_43 {dimension_numbers = #tpu.dot_dimension_numbers<[1], [0], [0], [1], [0, 0, 1, 1], [], []>} : vector<8x128xf32>, vector<128x128xf32>, vector<8x128xf32> -> vector<8x128xf32>
    %c6 = arith.constant 6 : index
    %c0_44 = arith.constant 0 : index
    %103 = vector.load %arg3[%c6, %c0_44] : memref<16x128xf32, #tpu.memory_space<vmem>>, vector<1x128xf32>
    %104 = vector.broadcast %103 : vector<1x128xf32> to vector<8x128xf32>
    %105 = arith.addf %102, %104 : vector<8x128xf32>
    %106 = vector.extract_strided_slice %105 {offsets = [0, 0], sizes = [8, 8], strides = [1, 1]} : vector<8x128xf32> to vector<8x8xf32>
    %107 = vector.extract_strided_slice %105 {offsets = [0, 8], sizes = [8, 8], strides = [1, 1]} : vector<8x128xf32> to vector<8x8xf32>
    %cst_45 = arith.constant 5.000000e-01 : f32
    %108 = vector.broadcast %cst_45 : f32 to vector<8x8xf32>
    %109 = arith.mulf %108, %107 : vector<8x8xf32>
    %110 = math.exp %109 : vector<8x8xf32>
    %111 = arith.mulf %1, %110 : vector<8x8xf32>
    %112 = arith.addf %106, %111 : vector<8x8xf32>
    %c0_46 = arith.constant 0 : index
    %c0_47 = arith.constant 0 : index
    %c0_48 = arith.constant 0 : index
    %113 = vector.load %arg2[%c0_46, %c0_47, %c0_48] : memref<3x128x128xf32, #tpu.memory_space<vmem>>, vector<1x8x128xf32>
    %114 = vector.shape_cast %113 : vector<1x8x128xf32> to vector<8x128xf32>
    %cst_49 = arith.constant dense<0.000000e+00> : vector<8x128xf32>
    %115 = tpu.matmul %112, %114, %cst_49 {dimension_numbers = #tpu.dot_dimension_numbers<[1], [0], [0], [1], [0, 0, 1, 1], [], []>} : vector<8x8xf32>, vector<8x128xf32>, vector<8x128xf32> -> vector<8x128xf32>
    %c7 = arith.constant 7 : index
    %c0_50 = arith.constant 0 : index
    %116 = vector.load %arg3[%c7, %c0_50] : memref<16x128xf32, #tpu.memory_space<vmem>>, vector<1x128xf32>
    %117 = vector.broadcast %116 : vector<1x128xf32> to vector<8x128xf32>
    %118 = arith.addf %115, %117 : vector<8x128xf32>
    %c8 = arith.constant 8 : index
    %c0_51 = arith.constant 0 : index
    %119 = vector.load %arg3[%c8, %c0_51] : memref<16x128xf32, #tpu.memory_space<vmem>>, vector<1x128xf32>
    %c9 = arith.constant 9 : index
    %c0_52 = arith.constant 0 : index
    %120 = vector.load %arg3[%c9, %c0_52] : memref<16x128xf32, #tpu.memory_space<vmem>>, vector<1x128xf32>
    %cst_53 = arith.constant dense<0.000000e+00> : vector<128xf32>
    %121 = vector.multi_reduction <add>, %118, %cst_53 [0] : vector<8x128xf32> to vector<128xf32>
    %122 = vector.shape_cast %121 : vector<128xf32> to vector<1x128xf32>
    %cst_54 = arith.constant 8.000000e+00 : f32
    %123 = vector.broadcast %cst_54 : f32 to vector<1x128xf32>
    %124 = arith.divf %122, %123 : vector<1x128xf32>
    %125 = arith.mulf %118, %118 : vector<8x128xf32>
    %cst_55 = arith.constant dense<0.000000e+00> : vector<128xf32>
    %126 = vector.multi_reduction <add>, %125, %cst_55 [0] : vector<8x128xf32> to vector<128xf32>
    %127 = vector.shape_cast %126 : vector<128xf32> to vector<1x128xf32>
    %cst_56 = arith.constant 8.000000e+00 : f32
    %128 = vector.broadcast %cst_56 : f32 to vector<1x128xf32>
    %129 = arith.divf %127, %128 : vector<1x128xf32>
    %130 = arith.mulf %124, %124 : vector<1x128xf32>
    %131 = arith.subf %129, %130 : vector<1x128xf32>
    %cst_57 = arith.constant 0.000000e+00 : f32
    %132 = vector.broadcast %cst_57 : f32 to vector<1x128xf32>
    %133 = arith.maximumf %131, %132 : vector<1x128xf32>
    %134 = vector.broadcast %124 : vector<1x128xf32> to vector<8x128xf32>
    %135 = arith.subf %118, %134 : vector<8x128xf32>
    %cst_58 = arith.constant 9.99999974E-6 : f32
    %136 = vector.broadcast %cst_58 : f32 to vector<1x128xf32>
    %137 = arith.addf %133, %136 : vector<1x128xf32>
    %138 = math.rsqrt %137 : vector<1x128xf32>
    %139 = vector.broadcast %138 : vector<1x128xf32> to vector<8x128xf32>
    %140 = arith.mulf %135, %139 : vector<8x128xf32>
    %141 = vector.broadcast %119 : vector<1x128xf32> to vector<8x128xf32>
    %142 = arith.mulf %140, %141 : vector<8x128xf32>
    %143 = vector.broadcast %120 : vector<1x128xf32> to vector<8x128xf32>
    %144 = arith.addf %142, %143 : vector<8x128xf32>
    %cst_59 = arith.constant 2.000000e+01 : f32
    %145 = vector.broadcast %cst_59 : f32 to vector<8x128xf32>
    %146 = arith.minimumf %144, %145 : vector<8x128xf32>
    %147 = math.exp %146 : vector<8x128xf32>
    %cst_60 = arith.constant 1.000000e+00 : f32
    %148 = vector.broadcast %cst_60 : f32 to vector<8x128xf32>
    %149 = arith.addf %148, %147 : vector<8x128xf32>
    %150 = arith.mulf %149, %149 : vector<8x128xf32>
    %cst_61 = arith.constant 1.000000e+00 : f32
    %151 = vector.broadcast %cst_61 : f32 to vector<8x128xf32>
    %152 = arith.subf %150, %151 : vector<8x128xf32>
    %cst_62 = arith.constant 1.000000e+00 : f32
    %153 = vector.broadcast %cst_62 : f32 to vector<8x128xf32>
    %154 = arith.addf %150, %153 : vector<8x128xf32>
    %155 = tpu.reciprocal %154 {approx = true} : vector<8x128xf32> -> vector<8x128xf32>
    %156 = arith.mulf %152, %155 : vector<8x128xf32>
    %cst_63 = arith.constant 2.000000e+01 : f32
    %157 = vector.broadcast %cst_63 : f32 to vector<8x128xf32>
    %158 = arith.cmpf ogt, %144, %157 : vector<8x128xf32>
    %cst_64 = arith.constant 1.000000e+00 : f32
    %159 = vector.broadcast %cst_64 : f32 to vector<8x128xf32>
    %160 = arith.select %158, %159, %156 : vector<8x128xi1>, vector<8x128xf32>
    %161 = arith.mulf %144, %160 : vector<8x128xf32>
    %c1_65 = arith.constant 1 : index
    %c0_66 = arith.constant 0 : index
    %c0_67 = arith.constant 0 : index
    %162 = vector.load %arg2[%c1_65, %c0_66, %c0_67] : memref<3x128x128xf32, #tpu.memory_space<vmem>>, vector<1x128x128xf32>
    %163 = vector.shape_cast %162 : vector<1x128x128xf32> to vector<128x128xf32>
    %cst_68 = arith.constant dense<0.000000e+00> : vector<8x128xf32>
    %164 = tpu.matmul %161, %163, %cst_68 {dimension_numbers = #tpu.dot_dimension_numbers<[1], [0], [0], [1], [0, 0, 1, 1], [], []>} : vector<8x128xf32>, vector<128x128xf32>, vector<8x128xf32> -> vector<8x128xf32>
    %c10 = arith.constant 10 : index
    %c0_69 = arith.constant 0 : index
    %165 = vector.load %arg3[%c10, %c0_69] : memref<16x128xf32, #tpu.memory_space<vmem>>, vector<1x128xf32>
    %166 = vector.broadcast %165 : vector<1x128xf32> to vector<8x128xf32>
    %167 = arith.addf %164, %166 : vector<8x128xf32>
    %c11 = arith.constant 11 : index
    %c0_70 = arith.constant 0 : index
    %168 = vector.load %arg3[%c11, %c0_70] : memref<16x128xf32, #tpu.memory_space<vmem>>, vector<1x128xf32>
    %c12 = arith.constant 12 : index
    %c0_71 = arith.constant 0 : index
    %169 = vector.load %arg3[%c12, %c0_71] : memref<16x128xf32, #tpu.memory_space<vmem>>, vector<1x128xf32>
    %cst_72 = arith.constant dense<0.000000e+00> : vector<128xf32>
    %170 = vector.multi_reduction <add>, %167, %cst_72 [0] : vector<8x128xf32> to vector<128xf32>
    %171 = vector.shape_cast %170 : vector<128xf32> to vector<1x128xf32>
    %cst_73 = arith.constant 8.000000e+00 : f32
    %172 = vector.broadcast %cst_73 : f32 to vector<1x128xf32>
    %173 = arith.divf %171, %172 : vector<1x128xf32>
    %174 = arith.mulf %167, %167 : vector<8x128xf32>
    %cst_74 = arith.constant dense<0.000000e+00> : vector<128xf32>
    %175 = vector.multi_reduction <add>, %174, %cst_74 [0] : vector<8x128xf32> to vector<128xf32>
    %176 = vector.shape_cast %175 : vector<128xf32> to vector<1x128xf32>
    %cst_75 = arith.constant 8.000000e+00 : f32
    %177 = vector.broadcast %cst_75 : f32 to vector<1x128xf32>
    %178 = arith.divf %176, %177 : vector<1x128xf32>
    %179 = arith.mulf %173, %173 : vector<1x128xf32>
    %180 = arith.subf %178, %179 : vector<1x128xf32>
    %cst_76 = arith.constant 0.000000e+00 : f32
    %181 = vector.broadcast %cst_76 : f32 to vector<1x128xf32>
    %182 = arith.maximumf %180, %181 : vector<1x128xf32>
    %183 = vector.broadcast %173 : vector<1x128xf32> to vector<8x128xf32>
    %184 = arith.subf %167, %183 : vector<8x128xf32>
    %cst_77 = arith.constant 9.99999974E-6 : f32
    %185 = vector.broadcast %cst_77 : f32 to vector<1x128xf32>
    %186 = arith.addf %182, %185 : vector<1x128xf32>
    %187 = math.rsqrt %186 : vector<1x128xf32>
    %188 = vector.broadcast %187 : vector<1x128xf32> to vector<8x128xf32>
    %189 = arith.mulf %184, %188 : vector<8x128xf32>
    %190 = vector.broadcast %168 : vector<1x128xf32> to vector<8x128xf32>
    %191 = arith.mulf %189, %190 : vector<8x128xf32>
    %192 = vector.broadcast %169 : vector<1x128xf32> to vector<8x128xf32>
    %193 = arith.addf %191, %192 : vector<8x128xf32>
    %cst_78 = arith.constant 2.000000e+01 : f32
    %194 = vector.broadcast %cst_78 : f32 to vector<8x128xf32>
    %195 = arith.minimumf %193, %194 : vector<8x128xf32>
    %196 = math.exp %195 : vector<8x128xf32>
    %cst_79 = arith.constant 1.000000e+00 : f32
    %197 = vector.broadcast %cst_79 : f32 to vector<8x128xf32>
    %198 = arith.addf %197, %196 : vector<8x128xf32>
    %199 = arith.mulf %198, %198 : vector<8x128xf32>
    %cst_80 = arith.constant 1.000000e+00 : f32
    %200 = vector.broadcast %cst_80 : f32 to vector<8x128xf32>
    %201 = arith.subf %199, %200 : vector<8x128xf32>
    %cst_81 = arith.constant 1.000000e+00 : f32
    %202 = vector.broadcast %cst_81 : f32 to vector<8x128xf32>
    %203 = arith.addf %199, %202 : vector<8x128xf32>
    %204 = tpu.reciprocal %203 {approx = true} : vector<8x128xf32> -> vector<8x128xf32>
    %205 = arith.mulf %201, %204 : vector<8x128xf32>
    %cst_82 = arith.constant 2.000000e+01 : f32
    %206 = vector.broadcast %cst_82 : f32 to vector<8x128xf32>
    %207 = arith.cmpf ogt, %193, %206 : vector<8x128xf32>
    %cst_83 = arith.constant 1.000000e+00 : f32
    %208 = vector.broadcast %cst_83 : f32 to vector<8x128xf32>
    %209 = arith.select %207, %208, %205 : vector<8x128xi1>, vector<8x128xf32>
    %210 = arith.mulf %193, %209 : vector<8x128xf32>
    %c2_84 = arith.constant 2 : index
    %c0_85 = arith.constant 0 : index
    %c0_86 = arith.constant 0 : index
    %211 = vector.load %arg2[%c2_84, %c0_85, %c0_86] : memref<3x128x128xf32, #tpu.memory_space<vmem>>, vector<1x128x128xf32>
    %212 = vector.shape_cast %211 : vector<1x128x128xf32> to vector<128x128xf32>
    %cst_87 = arith.constant dense<0.000000e+00> : vector<8x128xf32>
    %213 = tpu.matmul %210, %212, %cst_87 {dimension_numbers = #tpu.dot_dimension_numbers<[1], [0], [0], [1], [0, 0, 1, 1], [], []>} : vector<8x128xf32>, vector<128x128xf32>, vector<8x128xf32> -> vector<8x128xf32>
    %c13 = arith.constant 13 : index
    %c0_88 = arith.constant 0 : index
    %214 = vector.load %arg3[%c13, %c0_88] : memref<16x128xf32, #tpu.memory_space<vmem>>, vector<1x128xf32>
    %215 = vector.broadcast %214 : vector<1x128xf32> to vector<8x128xf32>
    %216 = arith.addf %213, %215 : vector<8x128xf32>
    %cst_89 = arith.constant 0.000000e+00 : f32
    %217 = vector.broadcast %cst_89 : f32 to vector<8x128xf32>
    %218 = arith.subf %217, %216 : vector<8x128xf32>
    %cst_90 = arith.constant 3.000000e+01 : f32
    %219 = vector.broadcast %cst_90 : f32 to vector<8x128xf32>
    %220 = arith.minimumf %218, %219 : vector<8x128xf32>
    %221 = math.exp %220 : vector<8x128xf32>
    %cst_91 = arith.constant 1.000000e+00 : f32
    %222 = vector.broadcast %cst_91 : f32 to vector<8x128xf32>
    %223 = arith.addf %222, %221 : vector<8x128xf32>
    %224 = tpu.reciprocal %223 {approx = true} : vector<8x128xf32> -> vector<8x128xf32>
    %c0_92 = arith.constant 0 : index
    %c0_93 = arith.constant 0 : index
    %225 = vector.load %arg4[%c0_92, %c0_93] : memref<8x256xf32, #tpu.memory_space<vmem>>, vector<8x128xf32>
    tpu.vector_store %arg4[%c0_92, %c0_93], %224 {strides = array<i32>} : memref<8x256xf32, #tpu.memory_space<vmem>>, vector<8x128xf32>,
    %c0_94 = arith.constant 0 : index
    %c128_95 = arith.constant 128 : index
    %226 = vector.load %arg4[%c0_94, %c128_95] : memref<8x256xf32, #tpu.memory_space<vmem>>, vector<8x128xf32>
    tpu.vector_store %arg4[%c0_94, %c128_95], %105 {strides = array<i32>} : memref<8x256xf32, #tpu.memory_space<vmem>>, vector<8x128xf32>,
    return
  }
}

</mosaic_0001>

<llo_original>
// kernel: vae_forward.1
$region0: #{vae_forward.1}
  #allocation0 [shape = 'u32[]', space=smem, size = 0x4, offset = 0x4, fixed_abs, tag = 'smem constant byte address 0x4 - core index']
  #allocation1 [shape = 'u32[144,128]{1,0:T(1,128)}', space=vmem, size = 0x12000, scoped, tag = 'internal scratch']
  %s0 = inlined_call_operand.vmem [shape: f32[8,256], index: 0, kind: input, shape index: {}]
  %s1 = inlined_call_operand.hbm [shape: f32[3,128,128], index: 1, kind: input, shape index: {}]
  %s2 = inlined_call_operand.hbm [shape: f32[3,128,128], index: 2, kind: input, shape index: {}]
  %s3 = inlined_call_operand.vmem [shape: f32[16,128], index: 3, kind: input, shape index: {}]
  %s4 = inlined_call_operand.vmem [shape: f32[8,256], index: 4, kind: output, shape index: {}]
  %s5 = sld [smem:[#allocation0]]
  $region34: #{vae_forward.1} parent=0
    _
  %s7 = ssub.s32 1, %s5
  %s8 = scalar_select 0, %s7, %s5
  $region1: #{vae_forward.1} parent=0
    #allocation2 [shape = 'u8[196608]{0}', space=vmem, size = 0x30000, scoped, tag = 'input window, operand 1, single buffered']
    #allocation3 [shape = 's32[1]{0}', space=sflag, size = 0x4, scoped, tag = 'scoped memory for vae_forward.1']
    #allocation4 [shape = 'u8[196608]{0}', space=vmem, size = 0x30000, scoped, tag = 'input window, operand 2, single buffered']
    #allocation5 [shape = 's32[1]{0}', space=sflag, size = 0x4, scoped, tag = 'scoped memory for vae_forward.1']
    %9 = vsyncpa [#allocation3], 0
    %10 = vsyncpa [#allocation5], 0
    // Predicated region
    $region2: #{vae_forward.1} parent=1 // pred_check
      _
    $region3: #{vae_forward.1} parent=1 // pred_check_branch
      %12 = sbr.rel (0) target = $region5
    $region4: #{vae_forward.1} parent=1 // pred_region
      _
    $region5: #{vae_forward.1} parent=1 // pred_fallthru
      _
    // Predicated region
    $region6: #{vae_forward.1} parent=1 // pred_check
      _
    $region7: #{vae_forward.1} parent=1 // pred_check_branch
      %14 = sbr.rel (0) target = $region9
    $region8: #{vae_forward.1} parent=1 // pred_region
      %s16 = ssub.s32 6144, 6144
      %17 = vsyncadd [#allocation3], %s16
      %s18 = sshll.u32 [#allocation2], 4
      %s19 = int_to_ptr.vmem [resolvable:$true] %s18
      %24 = dma.hbm_to_vmem [thread:$0]  %s1, 6144, %s19, [#allocation3], 128, 128, 8
    $region9: #{vae_forward.1} parent=1 // pred_fallthru
      _
    // Predicated region
    $region10: #{vae_forward.1} parent=1 // pred_check
      _
    $region11: #{vae_forward.1} parent=1 // pred_check_branch
      %26 = sbr.rel (0) target = $region13
    $region12: #{vae_forward.1} parent=1 // pred_region
      %s28 = ssub.s32 6144, 6144
      %29 = vsyncadd [#allocation5], %s28
      %s30 = sshll.u32 [#allocation4], 4
      %s31 = int_to_ptr.vmem [resolvable:$true] %s30
      %36 = dma.hbm_to_vmem [thread:$0]  %s2, 6144, %s31, [#allocation5], 128, 128, 8
    $region13: #{vae_forward.1} parent=1 // pred_fallthru
      _
    // Predicated region
    $region14: #{vae_forward.1} parent=1 // pred_check
      _
    $region15: #{vae_forward.1} parent=1 // pred_check_branch
      %38 = sbr.rel (0) target = $region17
    $region16: #{vae_forward.1} parent=1 // pred_region
      _
    $region17: #{vae_forward.1} parent=1 // pred_fallthru
      _
    // Predicated region
    $region18: #{vae_forward.1} parent=1 // pred_check
      _
    $region19: #{vae_forward.1} parent=1 // pred_check_branch
      %40 = sbr.rel (0) target = $region21
    $region20: #{vae_forward.1} parent=1 // pred_region
      %41 = dma.done [#allocation3], 6144
    $region21: #{vae_forward.1} parent=1 // pred_fallthru
      _
    // Predicated region
    $region22: #{vae_forward.1} parent=1 // pred_check
      _
    $region23: #{vae_forward.1} parent=1 // pred_check_branch
      %43 = sbr.rel (0) target = $region25
    $region24: #{vae_forward.1} parent=1 // pred_region
      %44 = dma.done [#allocation5], 6144
    $region25: #{vae_forward.1} parent=1 // pred_fallthru
      _
    %v45 = vld [vmem:[%s0] sm:$0xff]
    %v46 = vld [vmem:[%s0 + $0x8] sm:$0xff]
    %v47 = vld [vmem:[#allocation2] sm:$0xff]
    %v48 = vld [vmem:[#allocation2 + $0x8] sm:$0xff]
    %v49 = vld [vmem:[#allocation2 + $0x10] sm:$0xff]
    %v50 = vld [vmem:[#allocation2 + $0x18] sm:$0xff]
    %v51 = vld [vmem:[#allocation2 + $0x20] sm:$0xff]
    %v52 = vld [vmem:[#allocation2 + $0x28] sm:$0xff]
    %v53 = vld [vmem:[#allocation2 + $0x30] sm:$0xff]
    %v54 = vld [vmem:[#allocation2 + $0x38] sm:$0xff]
    %v55 = vld [vmem:[#allocation2 + $0x40] sm:$0xff]
    %v56 = vld [vmem:[#allocation2 + $0x48] sm:$0xff]
    %v57 = vld [vmem:[#allocation2 + $0x50] sm:$0xff]
    %v58 = vld [vmem:[#allocation2 + $0x58] sm:$0xff]
    %v59 = vld [vmem:[#allocation2 + $0x60] sm:$0xff]
    %v60 = vld [vmem:[#allocation2 + $0x68] sm:$0xff]
    %v61 = vld [vmem:[#allocation2 + $0x70] sm:$0xff]
    %v62 = vld [vmem:[#allocation2 + $0x78] sm:$0xff]
    %v63 = vld [vmem:[%s3] sm:$0x1]
    %v64 = vlaneseq
    %v65 = vshrl.u32 %v64, 7
    %v66 = vsub.s32 0, %v65
    %v67 = vrot.slane %v63, %v66
    %68 = vmatprep.subr.mxu0 0.0
    %69 = vmatpush1.msra.mxu0 %v47
    %70 = vmatprep.subr.mxu0 0.0
    %71 = vmatpush1.msra.mxu0 %v48
    %72 = vmatprep.subr.mxu0 0.0
    %73 = vmatpush1.msra.mxu0 %v49
    %74 = vmatprep.subr.mxu0 0.0
    %75 = vmatpush1.msra.mxu0 %v50
    %76 = vmatprep.subr.mxu0 0.0
    %77 = vmatpush1.msra.mxu0 %v51
    %78 = vmatprep.subr.mxu0 0.0
    %79 = vmatpush1.msra.mxu0 %v52
    %80 = vmatprep.subr.mxu0 0.0
    %81 = vmatpush1.msra.mxu0 %v53
    %82 = vmatprep.subr.mxu0 0.0
    %83 = vmatpush1.msra.mxu0 %v54
    %84 = vmatprep.subr.mxu0 0.0
    %85 = vmatpush1.msra.mxu0 %v55
    %86 = vmatprep.subr.mxu0 0.0
    %87 = vmatpush1.msra.mxu0 %v56
    %88 = vmatprep.subr.mxu0 0.0
    %89 = vmatpush1.msra.mxu0 %v57
    %90 = vmatprep.subr.mxu0 0.0
    %91 = vmatpush1.msra.mxu0 %v58
    %92 = vmatprep.subr.mxu0 0.0
    %93 = vmatpush1.msra.mxu0 %v59
    %94 = vmatprep.subr.mxu0 0.0
    %95 = vmatpush1.msra.mxu0 %v60
    %96 = vmatprep.subr.mxu0 0.0
    %97 = vmatpush1.msra.mxu0 %v61
    %98 = vmatprep.subr.mxu0 0.0
    %99 = vmatpush1.msra.mxu0 %v62
    %100 = vmatprep.subr.mxu0 0.0
    %101 = vmatpush1.msra.mxu0 0.0
    %102 = vmatprep.subr.mxu0 0.0
    %103 = vmatpush1.msra.mxu0 0.0
    %104 = vmatprep.subr.mxu0 0.0
    %105 = vmatpush1.msra.mxu0 0.0
    %106 = vmatprep.subr.mxu0 0.0
    %107 = vmatpush1.msra.mxu0 0.0
    %108 = vmatprep.subr.mxu0 0.0
    %109 = vmatpush1.msra.mxu0 0.0
    %110 = vmatprep.subr.mxu0 0.0
    %111 = vmatpush1.msra.mxu0 0.0
    %112 = vmatprep.subr.mxu0 0.0
    %113 = vmatpush1.msra.mxu0 0.0
    %114 = vmatprep.subr.mxu0 0.0
    %115 = vmatpush1.msra.mxu0 0.0
    %116 = vmatprep.subr.mxu0 0.0
    %117 = vmatpush1.msra.mxu0 0.0
    %118 = vmatprep.subr.mxu0 0.0
    %119 = vmatpush1.msra.mxu0 0.0
    %120 = vmatprep.subr.mxu0 0.0
    %121 = vmatpush1.msra.mxu0 0.0
    %122 = vmatprep.subr.mxu0 0.0
    %123 = vmatpush1.msra.mxu0 0.0
    %124 = vmatprep.subr.mxu0 0.0
    %125 = vmatpush1.msra.mxu0 0.0
    %126 = vmatprep.subr.mxu0 0.0
    %127 = vmatpush1.msra.mxu0 0.0
    %128 = vmatprep.subr.mxu0 0.0
    %129 = vmatpush1.msra.mxu0 0.0
    %130 = vmatprep.subr.mxu0 0.0
    %131 = vmatpush1.msra.mxu0 0.0
    %132 = vmatprep.mubr.f32.mxu0 0.0
    %133 = vmatmul.mubr.f32.gmra.mrb[0].mxu0 %v45
    %v134 = vpop.f32.mrb[0].mxu0
    %v135 = vadd.f32 %v67, %v134
    %v136 = vpop.f32.mrb[0].mxu0
    %137 = vdwg.mxu0
    %v138 = vld [vmem:[%s3 + $0x1] sm:$0x1]
    %v139 = vld [vmem:[%s3 + $0x2] sm:$0x1]
    %v140 = vrot.slane %v135, 4
    %v141 = vadd.f32 %v135, %v140
    %v142 = vrot.slane %v141, 2
    %v143 = vadd.f32 %v141, %v142
    %v144 = vrot.slane %v143, 1
    %v145 = vadd.f32 %v143, %v144
    %v146 = vrcp.pop 8.0
    %v147 = vmul.f32 %v145, %v146
    %v148 = vmul.f32 %v135, %v135
    %v149 = vrot.slane %v148, 4
    %v150 = vadd.f32 %v148, %v149
    %v151 = vrot.slane %v150, 2
    %v152 = vadd.f32 %v150, %v151
    %v153 = vrot.slane %v152, 1
    %v154 = vadd.f32 %v152, %v153
    %v155 = vmul.f32 %v154, %v146
    %v156 = vmul.f32 %v147, %v147
    %v157 = vsub.f32 %v155, %v156
    %v158 = vmax.f32 %v157, 0.0
    %v159 = vsub.f32 %v135, %v147
    %v160 = vadd.f32 %v158, 1e-05
    %v161 = vrsqrt.pop %v160
    %v162 = vmul.f32 %v159, %v161
    %v163 = vlaneseq
    %v164 = vshrl.u32 %v163, 7
    %v165 = vsub.s32 0, %v164
    %v166 = vrot.slane %v138, %v165
    %v167 = vmul.f32 %v162, %v166
    %v168 = vlaneseq
    %v169 = vshrl.u32 %v168, 7
    %v170 = vsub.s32 0, %v169
    %v171 = vrot.slane %v139, %v170
    %v172 = vadd.f32 %v167, %v171
    %v173 = vmin.f32 %v172, 20.0
    %v174 = vmul.f32 %v173, 1.442695
    %v175 = vpow.pop %v174
    %v176 = vadd.f32 %v175, 1.0
    %v177 = vmul.f32 %v176, %v176
    %v178 = vsub.f32 %v177, 1.0
    %v179 = vadd.f32 %v177, 1.0
    %v180 = vrcp.pop %v179
    %v181 = vmul.f32 %v178, %v180
    %vm182 = vcmp.gt.f32.partialorder %v172, 20.0
    %v183 = vsel %vm182, 1.0, %v181
    %v184 = vmul.f32 %v172, %v183
    %s185 = scalar_lea.vmem [#allocation2], 128
    %v186 = vld [vmem:[%s185] sm:$0xff]
    %v187 = vld [vmem:[%s185 + $0x8] sm:$0xff]
    %v188 = vld [vmem:[%s185 + $0x10] sm:$0xff]
    %v189 = vld [vmem:[%s185 + $0x18] sm:$0xff]
    %v190 = vld [vmem:[%s185 + $0x20] sm:$0xff]
    %v191 = vld [vmem:[%s185 + $0x28] sm:$0xff]
    %v192 = vld [vmem:[%s185 + $0x30] sm:$0xff]
    %v193 = vld [vmem:[%s185 + $0x38] sm:$0xff]
    %v194 = vld [vmem:[%s185 + $0x40] sm:$0xff]
    %v195 = vld [vmem:[%s185 + $0x48] sm:$0xff]
    %v196 = vld [vmem:[%s185 + $0x50] sm:$0xff]
    %v197 = vld [vmem:[%s185 + $0x58] sm:$0xff]
    %v198 = vld [vmem:[%s185 + $0x60] sm:$0xff]
    %v199 = vld [vmem:[%s185 + $0x68] sm:$0xff]
    %v200 = vld [vmem:[%s185 + $0x70] sm:$0xff]
    %v201 = vld [vmem:[%s185 + $0x78] sm:$0xff]
    %v202 = vld [vmem:[%s3 + $0x3] sm:$0x1]
    %v203 = vlaneseq
    %v204 = vshrl.u32 %v203, 7
    %v205 = vsub.s32 0, %v204
    %v206 = vrot.slane %v202, %v205
    %207 = vmatprep.subr.mxu0 0.0
    %208 = vmatpush1.msra.mxu0 %v186
    %209 = vmatprep.subr.mxu0 0.0
    %210 = vmatpush1.msra.mxu0 %v187
    %211 = vmatprep.subr.mxu0 0.0
    %212 = vmatpush1.msra.mxu0 %v188
    %213 = vmatprep.subr.mxu0 0.0
    %214 = vmatpush1.msra.mxu0 %v189
    %215 = vmatprep.subr.mxu0 0.0
    %216 = vmatpush1.msra.mxu0 %v190
    %217 = vmatprep.subr.mxu0 0.0
    %218 = vmatpush1.msra.mxu0 %v191
    %219 = vmatprep.subr.mxu0 0.0
    %220 = vmatpush1.msra.mxu0 %v192
    %221 = vmatprep.subr.mxu0 0.0
    %222 = vmatpush1.msra.mxu0 %v193
    %223 = vmatprep.subr.mxu0 0.0
    %224 = vmatpush1.msra.mxu0 %v194
    %225 = vmatprep.subr.mxu0 0.0
    %226 = vmatpush1.msra.mxu0 %v195
    %227 = vmatprep.subr.mxu0 0.0
    %228 = vmatpush1.msra.mxu0 %v196
    %229 = vmatprep.subr.mxu0 0.0
    %230 = vmatpush1.msra.mxu0 %v197
    %231 = vmatprep.subr.mxu0 0.0
    %232 = vmatpush1.msra.mxu0 %v198
    %233 = vmatprep.subr.mxu0 0.0
    %234 = vmatpush1.msra.mxu0 %v199
    %235 = vmatprep.subr.mxu0 0.0
    %236 = vmatpush1.msra.mxu0 %v200
    %237 = vmatprep.subr.mxu0 0.0
    %238 = vmatpush1.msra.mxu0 %v201
    %239 = vmatprep.subr.mxu0 0.0
    %240 = vmatpush1.msra.mxu0 0.0
    %241 = vmatprep.subr.mxu0 0.0
    %242 = vmatpush1.msra.mxu0 0.0
    %243 = vmatprep.subr.mxu0 0.0
    %244 = vmatpush1.msra.mxu0 0.0
    %245 = vmatprep.subr.mxu0 0.0
    %246 = vmatpush1.msra.mxu0 0.0
    %247 = vmatprep.subr.mxu0 0.0
    %248 = vmatpush1.msra.mxu0 0.0
    %249 = vmatprep.subr.mxu0 0.0
    %250 = vmatpush1.msra.mxu0 0.0
    %251 = vmatprep.subr.mxu0 0.0
    %252 = vmatpush1.msra.mxu0 0.0
    %253 = vmatprep.subr.mxu0 0.0
    %254 = vmatpush1.msra.mxu0 0.0
    %255 = vmatprep.subr.mxu0 0.0
    %256 = vmatpush1.msra.mxu0 0.0
    %257 = vmatprep.subr.mxu0 0.0
    %258 = vmatpush1.msra.mxu0 0.0
    %259 = vmatprep.subr.mxu0 0.0
    %260 = vmatpush1.msra.mxu0 0.0
    %261 = vmatprep.subr.mxu0 0.0
    %262 = vmatpush1.msra.mxu0 0.0
    %263 = vmatprep.subr.mxu0 0.0
    %264 = vmatpush1.msra.mxu0 0.0
    %265 = vmatprep.subr.mxu0 0.0
    %266 = vmatpush1.msra.mxu0 0.0
    %267 = vmatprep.subr.mxu0 0.0
    %268 = vmatpush1.msra.mxu0 0.0
    %269 = vmatprep.subr.mxu0 0.0
    %270 = vmatpush1.msra.mxu0 0.0
    %271 = vmatprep.mubr.f32.mxu0 0.0
    %272 = vmatmul.mubr.f32.gmra.mrb[0].mxu0 %v184
    %v273 = vpop.f32.mrb[0].mxu0
    %v274 = vadd.f32 %v206, %v273
    %v275 = vpop.f32.mrb[0].mxu0
    %276 = vdwg.mxu0
    %v277 = vld [vmem:[%s3 + $0x4] sm:$0x1]
    %v278 = vld [vmem:[%s3 + $0x5] sm:$0x1]
    %v279 = vrot.slane %v274, 4
    %v280 = vadd.f32 %v274, %v279
    %v281 = vrot.slane %v280, 2
    %v282 = vadd.f32 %v280, %v281
    %v283 = vrot.slane %v282, 1
    %v284 = vadd.f32 %v282, %v283
    %v285 = vmul.f32 %v284, %v146
    %v286 = vmul.f32 %v274, %v274
    %v287 = vrot.slane %v286, 4
    %v288 = vadd.f32 %v286, %v287
    %v289 = vrot.slane %v288, 2
    %v290 = vadd.f32 %v288, %v289
    %v291 = vrot.slane %v290, 1
    %v292 = vadd.f32 %v290, %v291
    %v293 = vmul.f32 %v292, %v146
    %v294 = vmul.f32 %v285, %v285
    %v295 = vsub.f32 %v293, %v294
    %v296 = vmax.f32 %v295, 0.0
    %v297 = vsub.f32 %v274, %v285
    %v298 = vadd.f32 %v296, 1e-05
    %v299 = vrsqrt.pop %v298
    %v300 = vmul.f32 %v297, %v299
    %v301 = vlaneseq
    %v302 = vshrl.u32 %v301, 7
    %v303 = vsub.s32 0, %v302
    %v304 = vrot.slane %v277, %v303
    %v305 = vmul.f32 %v300, %v304
    %v306 = vlaneseq
    %v307 = vshrl.u32 %v306, 7
    %v308 = vsub.s32 0, %v307
    %v309 = vrot.slane %v278, %v308
    %v310 = vadd.f32 %v305, %v309
    %v311 = vmin.f32 %v310, 20.0
    %v312 = vmul.f32 %v311, 1.442695
    %v313 = vpow.pop %v312
    %v314 = vadd.f32 %v313, 1.0
    %v315 = vmul.f32 %v314, %v314
    %v316 = vsub.f32 %v315, 1.0
    %v317 = vadd.f32 %v315, 1.0
    %v318 = vrcp.pop %v317
    %v319 = vmul.f32 %v316, %v318
    %vm320 = vcmp.gt.f32.partialorder %v310, 20.0
    %v321 = vsel %vm320, 1.0, %v319
    %v322 = vmul.f32 %v310, %v321
    %s323 = scalar_lea.vmem [#allocation2], 256
    %v324 = vld [vmem:[%s323] sm:$0xff]
    %v325 = vld [vmem:[%s323 + $0x8] sm:$0xff]
    %v326 = vld [vmem:[%s323 + $0x10] sm:$0xff]
    %v327 = vld [vmem:[%s323 + $0x18] sm:$0xff]
    %v328 = vld [vmem:[%s323 + $0x20] sm:$0xff]
    %v329 = vld [vmem:[%s323 + $0x28] sm:$0xff]
    %v330 = vld [vmem:[%s323 + $0x30] sm:$0xff]
    %v331 = vld [vmem:[%s323 + $0x38] sm:$0xff]
    %v332 = vld [vmem:[%s323 + $0x40] sm:$0xff]
    %v333 = vld [vmem:[%s323 + $0x48] sm:$0xff]
    %v334 = vld [vmem:[%s323 + $0x50] sm:$0xff]
    %v335 = vld [vmem:[%s323 + $0x58] sm:$0xff]
    %v336 = vld [vmem:[%s323 + $0x60] sm:$0xff]
    %v337 = vld [vmem:[%s323 + $0x68] sm:$0xff]
    %v338 = vld [vmem:[%s323 + $0x70] sm:$0xff]
    %v339 = vld [vmem:[%s323 + $0x78] sm:$0xff]
    %v340 = vld [vmem:[%s3 + $0x6] sm:$0x1]
    %v341 = vlaneseq
    %v342 = vshrl.u32 %v341, 7
    %v343 = vsub.s32 0, %v342
    %v344 = vrot.slane %v340, %v343
    %345 = vmatprep.subr.mxu0 0.0
    %346 = vmatpush1.msra.mxu0 %v324
    %347 = vmatprep.subr.mxu0 0.0
    %348 = vmatpush1.msra.mxu0 %v325
    %349 = vmatprep.subr.mxu0 0.0
    %350 = vmatpush1.msra.mxu0 %v326
    %351 = vmatprep.subr.mxu0 0.0
    %352 = vmatpush1.msra.mxu0 %v327
    %353 = vmatprep.subr.mxu0 0.0
    %354 = vmatpush1.msra.mxu0 %v328
    %355 = vmatprep.subr.mxu0 0.0
    %356 = vmatpush1.msra.mxu0 %v329
    %357 = vmatprep.subr.mxu0 0.0
    %358 = vmatpush1.msra.mxu0 %v330
    %359 = vmatprep.subr.mxu0 0.0
    %360 = vmatpush1.msra.mxu0 %v331
    %361 = vmatprep.subr.mxu0 0.0
    %362 = vmatpush1.msra.mxu0 %v332
    %363 = vmatprep.subr.mxu0 0.0
    %364 = vmatpush1.msra.mxu0 %v333
    %365 = vmatprep.subr.mxu0 0.0
    %366 = vmatpush1.msra.mxu0 %v334
    %367 = vmatprep.subr.mxu0 0.0
    %368 = vmatpush1.msra.mxu0 %v335
    %369 = vmatprep.subr.mxu0 0.0
    %370 = vmatpush1.msra.mxu0 %v336
    %371 = vmatprep.subr.mxu0 0.0
    %372 = vmatpush1.msra.mxu0 %v337
    %373 = vmatprep.subr.mxu0 0.0
    %374 = vmatpush1.msra.mxu0 %v338
    %375 = vmatprep.subr.mxu0 0.0
    %376 = vmatpush1.msra.mxu0 %v339
    %377 = vmatprep.subr.mxu0 0.0
    %378 = vmatpush1.msra.mxu0 0.0
    %379 = vmatprep.subr.mxu0 0.0
    %380 = vmatpush1.msra.mxu0 0.0
    %381 = vmatprep.subr.mxu0 0.0
    %382 = vmatpush1.msra.mxu0 0.0
    %383 = vmatprep.subr.mxu0 0.0
    %384 = vmatpush1.msra.mxu0 0.0
    %385 = vmatprep.subr.mxu0 0.0
    %386 = vmatpush1.msra.mxu0 0.0
    %387 = vmatprep.subr.mxu0 0.0
    %388 = vmatpush1.msra.mxu0 0.0
    %389 = vmatprep.subr.mxu0 0.0
    %390 = vmatpush1.msra.mxu0 0.0
    %391 = vmatprep.subr.mxu0 0.0
    %392 = vmatpush1.msra.mxu0 0.0
    %393 = vmatprep.subr.mxu0 0.0
    %394 = vmatpush1.msra.mxu0 0.0
    %395 = vmatprep.subr.mxu0 0.0
    %396 = vmatpush1.msra.mxu0 0.0
    %397 = vmatprep.subr.mxu0 0.0
    %398 = vmatpush1.msra.mxu0 0.0
    %399 = vmatprep.subr.mxu0 0.0
    %400 = vmatpush1.msra.mxu0 0.0
    %401 = vmatprep.subr.mxu0 0.0
    %402 = vmatpush1.msra.mxu0 0.0
    %403 = vmatprep.subr.mxu0 0.0
    %404 = vmatpush1.msra.mxu0 0.0
    %405 = vmatprep.subr.mxu0 0.0
    %406 = vmatpush1.msra.mxu0 0.0
    %407 = vmatprep.subr.mxu0 0.0
    %408 = vmatpush1.msra.mxu0 0.0
    %409 = vmatprep.mubr.f32.mxu0 0.0
    %410 = vmatmul.mubr.f32.gmra.mrb[0].mxu0 %v322
    %v411 = vpop.f32.mrb[0].mxu0
    %v412 = vadd.f32 %v344, %v411
    %v413 = vpop.f32.mrb[0].mxu0
    %414 = vdwg.mxu0
    %v415 = vmul.f32 %v412, 0.5
    %v416 = vmul.f32 %v415, 1.442695
    %v417 = vpow.pop %v416
    %419 = vrot.lane.b32.xlu0 %v417, 120
    %v420 = vpop.permute.xlu0 %419
    %v422 = vmul.f32 %v46, %v420
    %v423 = vadd.f32 %v412, %v422
    %v424 = vld [vmem:[#allocation4] sm:$0xff]
    %v425 = vld [vmem:[%s3 + $0x7] sm:$0x1]
    %v426 = vlaneseq
    %v427 = vshrl.u32 %v426, 7
    %v428 = vsub.s32 0, %v427
    %v429 = vrot.slane %v425, %v428
    %vm430 = vcmask 64512
    %v432 = vsel %vm430, %v423, 0
    %434 = vmatprep.subr.mxu0 0.0
    %435 = vmatpush1.msra.mxu0 %v424
    %436 = vmatprep.subr.mxu0 0.0
    %437 = vmatpush1.msra.mxu0 0.0
    %438 = vmatprep.subr.mxu0 0.0
    %439 = vmatpush1.msra.mxu0 0.0
    %440 = vmatprep.subr.mxu0 0.0
    %441 = vmatpush1.msra.mxu0 0.0
    %442 = vmatprep.subr.mxu0 0.0
    %443 = vmatpush1.msra.mxu0 0.0
    %444 = vmatprep.subr.mxu0 0.0
    %445 = vmatpush1.msra.mxu0 0.0
    %446 = vmatprep.subr.mxu0 0.0
    %447 = vmatpush1.msra.mxu0 0.0
    %448 = vmatprep.subr.mxu0 0.0
    %449 = vmatpush1.msra.mxu0 0.0
    %450 = vmatprep.subr.mxu0 0.0
    %451 = vmatpush1.msra.mxu0 0.0
    %452 = vmatprep.subr.mxu0 0.0
    %453 = vmatpush1.msra.mxu0 0.0
    %454 = vmatprep.subr.mxu0 0.0
    %455 = vmatpush1.msra.mxu0 0.0
    %456 = vmatprep.subr.mxu0 0.0
    %457 = vmatpush1.msra.mxu0 0.0
    %458 = vmatprep.subr.mxu0 0.0
    %459 = vmatpush1.msra.mxu0 0.0
    %460 = vmatprep.subr.mxu0 0.0
    %461 = vmatpush1.msra.mxu0 0.0
    %462 = vmatprep.subr.mxu0 0.0
    %463 = vmatpush1.msra.mxu0 0.0
    %464 = vmatprep.subr.mxu0 0.0
    %465 = vmatpush1.msra.mxu0 0.0
    %466 = vmatprep.subr.mxu0 0.0
    %467 = vmatpush1.msra.mxu0 0.0
    %468 = vmatprep.subr.mxu0 0.0
    %469 = vmatpush1.msra.mxu0 0.0
    %470 = vmatprep.subr.mxu0 0.0
    %471 = vmatpush1.msra.mxu0 0.0
    %472 = vmatprep.subr.mxu0 0.0
    %473 = vmatpush1.msra.mxu0 0.0
    %474 = vmatprep.subr.mxu0 0.0
    %475 = vmatpush1.msra.mxu0 0.0
    %476 = vmatprep.subr.mxu0 0.0
    %477 = vmatpush1.msra.mxu0 0.0
    %478 = vmatprep.subr.mxu0 0.0
    %479 = vmatpush1.msra.mxu0 0.0
    %480 = vmatprep.subr.mxu0 0.0
    %481 = vmatpush1.msra.mxu0 0.0
    %482 = vmatprep.subr.mxu0 0.0
    %483 = vmatpush1.msra.mxu0 0.0
    %484 = vmatprep.subr.mxu0 0.0
    %485 = vmatpush1.msra.mxu0 0.0
    %486 = vmatprep.subr.mxu0 0.0
    %487 = vmatpush1.msra.mxu0 0.0
    %488 = vmatprep.subr.mxu0 0.0
    %489 = vmatpush1.msra.mxu0 0.0
    %490 = vmatprep.subr.mxu0 0.0
    %491 = vmatpush1.msra.mxu0 0.0
    %492 = vmatprep.subr.mxu0 0.0
    %493 = vmatpush1.msra.mxu0 0.0
    %494 = vmatprep.subr.mxu0 0.0
    %495 = vmatpush1.msra.mxu0 0.0
    %496 = vmatprep.subr.mxu0 0.0
    %497 = vmatpush1.msra.mxu0 0.0
    %498 = vmatprep.mubr.f32.mxu0 0.0
    %499 = vmatmul.mubr.f32.gmra.mrb[0].mxu0 %v432
    %v500 = vpop.f32.mrb[0].mxu0
    %v501 = vadd.f32 %v429, %v500
    %v502 = vpop.f32.mrb[0].mxu0
    %503 = vdwg.mxu0
    %v504 = vld [vmem:[%s3 + $0x8] sm:$0x1]
    %v505 = vld [vmem:[%s3 + $0x9] sm:$0x1]
    %v506 = vrot.slane %v501, 4
    %v507 = vadd.f32 %v501, %v506
    %v508 = vrot.slane %v507, 2
    %v509 = vadd.f32 %v507, %v508
    %v510 = vrot.slane %v509, 1
    %v511 = vadd.f32 %v509, %v510
    %v512 = vmul.f32 %v511, %v146
    %v513 = vmul.f32 %v501, %v501
    %v514 = vrot.slane %v513, 4
    %v515 = vadd.f32 %v513, %v514
    %v516 = vrot.slane %v515, 2
    %v517 = vadd.f32 %v515, %v516
    %v518 = vrot.slane %v517, 1
    %v519 = vadd.f32 %v517, %v518
    %v520 = vmul.f32 %v519, %v146
    %v521 = vmul.f32 %v512, %v512
    %v522 = vsub.f32 %v520, %v521
    %v523 = vmax.f32 %v522, 0.0
    %v524 = vsub.f32 %v501, %v512
    %v525 = vadd.f32 %v523, 1e-05
    %v526 = vrsqrt.pop %v525
    %v527 = vmul.f32 %v524, %v526
    %v528 = vlaneseq
    %v529 = vshrl.u32 %v528, 7
    %v530 = vsub.s32 0, %v529
    %v531 = vrot.slane %v504, %v530
    %v532 = vmul.f32 %v527, %v531
    %v533 = vlaneseq
    %v534 = vshrl.u32 %v533, 7
    %v535 = vsub.s32 0, %v534
    %v536 = vrot.slane %v505, %v535
    %v537 = vadd.f32 %v532, %v536
    %v538 = vmin.f32 %v537, 20.0
    %v539 = vmul.f32 %v538, 1.442695
    %v540 = vpow.pop %v539
    %v541 = vadd.f32 %v540, 1.0
    %v542 = vmul.f32 %v541, %v541
    %v543 = vsub.f32 %v542, 1.0
    %v544 = vadd.f32 %v542, 1.0
    %v545 = vrcp.pop %v544
    %v546 = vmul.f32 %v543, %v545
    %vm547 = vcmp.gt.f32.partialorder %v537, 20.0
    %v548 = vsel %vm547, 1.0, %v546
    %v549 = vmul.f32 %v537, %v548
    %s550 = scalar_lea.vmem [#allocation4], 128
    %v551 = vld [vmem:[%s550] sm:$0xff]
    %v552 = vld [vmem:[%s550 + $0x8] sm:$0xff]
    %v553 = vld [vmem:[%s550 + $0x10] sm:$0xff]
    %v554 = vld [vmem:[%s550 + $0x18] sm:$0xff]
    %v555 = vld [vmem:[%s550 + $0x20] sm:$0xff]
    %v556 = vld [vmem:[%s550 + $0x28] sm:$0xff]
    %v557 = vld [vmem:[%s550 + $0x30] sm:$0xff]
    %v558 = vld [vmem:[%s550 + $0x38] sm:$0xff]
    %v559 = vld [vmem:[%s550 + $0x40] sm:$0xff]
    %v560 = vld [vmem:[%s550 + $0x48] sm:$0xff]
    %v561 = vld [vmem:[%s550 + $0x50] sm:$0xff]
    %v562 = vld [vmem:[%s550 + $0x58] sm:$0xff]
    %v563 = vld [vmem:[%s550 + $0x60] sm:$0xff]
    %v564 = vld [vmem:[%s550 + $0x68] sm:$0xff]
    %v565 = vld [vmem:[%s550 + $0x70] sm:$0xff]
    %v566 = vld [vmem:[%s550 + $0x78] sm:$0xff]
    %v567 = vld [vmem:[%s3 + $0xa] sm:$0x1]
    %v568 = vlaneseq
    %v569 = vshrl.u32 %v568, 7
    %v570 = vsub.s32 0, %v569
    %v571 = vrot.slane %v567, %v570
    %572 = vmatprep.subr.mxu0 0.0
    %573 = vmatpush1.msra.mxu0 %v551
    %574 = vmatprep.subr.mxu0 0.0
    %575 = vmatpush1.msra.mxu0 %v552
    %576 = vmatprep.subr.mxu0 0.0
    %577 = vmatpush1.msra.mxu0 %v553
    %578 = vmatprep.subr.mxu0 0.0
    %579 = vmatpush1.msra.mxu0 %v554
    %580 = vmatprep.subr.mxu0 0.0
    %581 = vmatpush1.msra.mxu0 %v555
    %582 = vmatprep.subr.mxu0 0.0
    %583 = vmatpush1.msra.mxu0 %v556
    %584 = vmatprep.subr.mxu0 0.0
    %585 = vmatpush1.msra.mxu0 %v557
    %586 = vmatprep.subr.mxu0 0.0
    %587 = vmatpush1.msra.mxu0 %v558
    %588 = vmatprep.subr.mxu0 0.0
    %589 = vmatpush1.msra.mxu0 %v559
    %590 = vmatprep.subr.mxu0 0.0
    %591 = vmatpush1.msra.mxu0 %v560
    %592 = vmatprep.subr.mxu0 0.0
    %593 = vmatpush1.msra.mxu0 %v561
    %594 = vmatprep.subr.mxu0 0.0
    %595 = vmatpush1.msra.mxu0 %v562
    %596 = vmatprep.subr.mxu0 0.0
    %597 = vmatpush1.msra.mxu0 %v563
    %598 = vmatprep.subr.mxu0 0.0
    %599 = vmatpush1.msra.mxu0 %v564
    %600 = vmatprep.subr.mxu0 0.0
    %601 = vmatpush1.msra.mxu0 %v565
    %602 = vmatprep.subr.mxu0 0.0
    %603 = vmatpush1.msra.mxu0 %v566
    %604 = vmatprep.subr.mxu0 0.0
    %605 = vmatpush1.msra.mxu0 0.0
    %606 = vmatprep.subr.mxu0 0.0
    %607 = vmatpush1.msra.mxu0 0.0
    %608 = vmatprep.subr.mxu0 0.0
    %609 = vmatpush1.msra.mxu0 0.0
    %610 = vmatprep.subr.mxu0 0.0
    %611 = vmatpush1.msra.mxu0 0.0
    %612 = vmatprep.subr.mxu0 0.0
    %613 = vmatpush1.msra.mxu0 0.0
    %614 = vmatprep.subr.mxu0 0.0
    %615 = vmatpush1.msra.mxu0 0.0
    %616 = vmatprep.subr.mxu0 0.0
    %617 = vmatpush1.msra.mxu0 0.0
    %618 = vmatprep.subr.mxu0 0.0
    %619 = vmatpush1.msra.mxu0 0.0
    %620 = vmatprep.subr.mxu0 0.0
    %621 = vmatpush1.msra.mxu0 0.0
    %622 = vmatprep.subr.mxu0 0.0
    %623 = vmatpush1.msra.mxu0 0.0
    %624 = vmatprep.subr.mxu0 0.0
    %625 = vmatpush1.msra.mxu0 0.0
    %626 = vmatprep.subr.mxu0 0.0
    %627 = vmatpush1.msra.mxu0 0.0
    %628 = vmatprep.subr.mxu0 0.0
    %629 = vmatpush1.msra.mxu0 0.0
    %630 = vmatprep.subr.mxu0 0.0
    %631 = vmatpush1.msra.mxu0 0.0
    %632 = vmatprep.subr.mxu0 0.0
    %633 = vmatpush1.msra.mxu0 0.0
    %634 = vmatprep.subr.mxu0 0.0
    %635 = vmatpush1.msra.mxu0 0.0
    %636 = vmatprep.mubr.f32.mxu0 0.0
    %637 = vmatmul.mubr.f32.gmra.mrb[0].mxu0 %v549
    %v638 = vpop.f32.mrb[0].mxu0
    %v639 = vadd.f32 %v571, %v638
    %v640 = vpop.f32.mrb[0].mxu0
    %641 = vdwg.mxu0
    %v642 = vld [vmem:[%s3 + $0xb] sm:$0x1]
    %v643 = vld [vmem:[%s3 + $0xc] sm:$0x1]
    %v644 = vrot.slane %v639, 4
    %v645 = vadd.f32 %v639, %v644
    %v646 = vrot.slane %v645, 2
    %v647 = vadd.f32 %v645, %v646
    %v648 = vrot.slane %v647, 1
    %v649 = vadd.f32 %v647, %v648
    %v650 = vmul.f32 %v649, %v146
    %v651 = vmul.f32 %v639, %v639
    %v652 = vrot.slane %v651, 4
    %v653 = vadd.f32 %v651, %v652
    %v654 = vrot.slane %v653, 2
    %v655 = vadd.f32 %v653, %v654
    %v656 = vrot.slane %v655, 1
    %v657 = vadd.f32 %v655, %v656
    %v658 = vmul.f32 %v657, %v146
    %v659 = vmul.f32 %v650, %v650
    %v660 = vsub.f32 %v658, %v659
    %v661 = vmax.f32 %v660, 0.0
    %v662 = vsub.f32 %v639, %v650
    %v663 = vadd.f32 %v661, 1e-05
    %v664 = vrsqrt.pop %v663
    %v665 = vmul.f32 %v662, %v664
    %v666 = vlaneseq
    %v667 = vshrl.u32 %v666, 7
    %v668 = vsub.s32 0, %v667
    %v669 = vrot.slane %v642, %v668
    %v670 = vmul.f32 %v665, %v669
    %v671 = vlaneseq
    %v672 = vshrl.u32 %v671, 7
    %v673 = vsub.s32 0, %v672
    %v674 = vrot.slane %v643, %v673
    %v675 = vadd.f32 %v670, %v674
    %v676 = vmin.f32 %v675, 20.0
    %v677 = vmul.f32 %v676, 1.442695
    %v678 = vpow.pop %v677
    %v679 = vadd.f32 %v678, 1.0
    %v680 = vmul.f32 %v679, %v679
    %v681 = vsub.f32 %v680, 1.0
    %v682 = vadd.f32 %v680, 1.0
    %v683 = vrcp.pop %v682
    %v684 = vmul.f32 %v681, %v683
    %vm685 = vcmp.gt.f32.partialorder %v675, 20.0
    %v686 = vsel %vm685, 1.0, %v684
    %v687 = vmul.f32 %v675, %v686
    %s688 = scalar_lea.vmem [#allocation4], 256
    %v689 = vld [vmem:[%s688] sm:$0xff]
    %v690 = vld [vmem:[%s688 + $0x8] sm:$0xff]
    %v691 = vld [vmem:[%s688 + $0x10] sm:$0xff]
    %v692 = vld [vmem:[%s688 + $0x18] sm:$0xff]
    %v693 = vld [vmem:[%s688 + $0x20] sm:$0xff]
    %v694 = vld [vmem:[%s688 + $0x28] sm:$0xff]
    %v695 = vld [vmem:[%s688 + $0x30] sm:$0xff]
    %v696 = vld [vmem:[%s688 + $0x38] sm:$0xff]
    %v697 = vld [vmem:[%s688 + $0x40] sm:$0xff]
    %v698 = vld [vmem:[%s688 + $0x48] sm:$0xff]
    %v699 = vld [vmem:[%s688 + $0x50] sm:$0xff]
    %v700 = vld [vmem:[%s688 + $0x58] sm:$0xff]
    %v701 = vld [vmem:[%s688 + $0x60] sm:$0xff]
    %v702 = vld [vmem:[%s688 + $0x68] sm:$0xff]
    %v703 = vld [vmem:[%s688 + $0x70] sm:$0xff]
    %v704 = vld [vmem:[%s688 + $0x78] sm:$0xff]
    %v705 = vld [vmem:[%s3 + $0xd] sm:$0x1]
    %v706 = vlaneseq
    %v707 = vshrl.u32 %v706, 7
    %v708 = vsub.s32 0, %v707
    %v709 = vrot.slane %v705, %v708
    %710 = vmatprep.subr.mxu0 0.0
    %711 = vmatpush1.msra.mxu0 %v689
    %712 = vmatprep.subr.mxu0 0.0
    %713 = vmatpush1.msra.mxu0 %v690
    %714 = vmatprep.subr.mxu0 0.0
    %715 = vmatpush1.msra.mxu0 %v691
    %716 = vmatprep.subr.mxu0 0.0
    %717 = vmatpush1.msra.mxu0 %v692
    %718 = vmatprep.subr.mxu0 0.0
    %719 = vmatpush1.msra.mxu0 %v693
    %720 = vmatprep.subr.mxu0 0.0
    %721 = vmatpush1.msra.mxu0 %v694
    %722 = vmatprep.subr.mxu0 0.0
    %723 = vmatpush1.msra.mxu0 %v695
    %724 = vmatprep.subr.mxu0 0.0
    %725 = vmatpush1.msra.mxu0 %v696
    %726 = vmatprep.subr.mxu0 0.0
    %727 = vmatpush1.msra.mxu0 %v697
    %728 = vmatprep.subr.mxu0 0.0
    %729 = vmatpush1.msra.mxu0 %v698
    %730 = vmatprep.subr.mxu0 0.0
    %731 = vmatpush1.msra.mxu0 %v699
    %732 = vmatprep.subr.mxu0 0.0
    %733 = vmatpush1.msra.mxu0 %v700
    %734 = vmatprep.subr.mxu0 0.0
    %735 = vmatpush1.msra.mxu0 %v701
    %736 = vmatprep.subr.mxu0 0.0
    %737 = vmatpush1.msra.mxu0 %v702
    %738 = vmatprep.subr.mxu0 0.0
    %739 = vmatpush1.msra.mxu0 %v703
    %740 = vmatprep.subr.mxu0 0.0
    %741 = vmatpush1.msra.mxu0 %v704
    %742 = vmatprep.subr.mxu0 0.0
    %743 = vmatpush1.msra.mxu0 0.0
    %744 = vmatprep.subr.mxu0 0.0
    %745 = vmatpush1.msra.mxu0 0.0
    %746 = vmatprep.subr.mxu0 0.0
    %747 = vmatpush1.msra.mxu0 0.0
    %748 = vmatprep.subr.mxu0 0.0
    %749 = vmatpush1.msra.mxu0 0.0
    %750 = vmatprep.subr.mxu0 0.0
    %751 = vmatpush1.msra.mxu0 0.0
    %752 = vmatprep.subr.mxu0 0.0
    %753 = vmatpush1.msra.mxu0 0.0
    %754 = vmatprep.subr.mxu0 0.0
    %755 = vmatpush1.msra.mxu0 0.0
    %756 = vmatprep.subr.mxu0 0.0
    %757 = vmatpush1.msra.mxu0 0.0
    %758 = vmatprep.subr.mxu0 0.0
    %759 = vmatpush1.msra.mxu0 0.0
    %760 = vmatprep.subr.mxu0 0.0
    %761 = vmatpush1.msra.mxu0 0.0
    %762 = vmatprep.subr.mxu0 0.0
    %763 = vmatpush1.msra.mxu0 0.0
    %764 = vmatprep.subr.mxu0 0.0
    %765 = vmatpush1.msra.mxu0 0.0
    %766 = vmatprep.subr.mxu0 0.0
    %767 = vmatpush1.msra.mxu0 0.0
    %768 = vmatprep.subr.mxu0 0.0
    %769 = vmatpush1.msra.mxu0 0.0
    %770 = vmatprep.subr.mxu0 0.0
    %771 = vmatpush1.msra.mxu0 0.0
    %772 = vmatprep.subr.mxu0 0.0
    %773 = vmatpush1.msra.mxu0 0.0
    %774 = vmatprep.mubr.f32.mxu0 0.0
    %775 = vmatmul.mubr.f32.gmra.mrb[0].mxu0 %v687
    %v776 = vpop.f32.mrb[0].mxu0
    %v777 = vadd.f32 %v709, %v776
    %v778 = vpop.f32.mrb[0].mxu0
    %779 = vdwg.mxu0
    %v780 = vsub.f32 0.0, %v777
    %v781 = vmin.f32 %v780, 30.0
    %v782 = vmul.f32 %v781, 1.442695
    %v783 = vpow.pop %v782
    %v784 = vadd.f32 %v783, 1.0
    %v785 = vrcp.pop %v784
    %786 = vst [vmem:[%s4] sm:$0xff] %v785
    %787 = vst [vmem:[%s4 + $0x8] sm:$0xff] %v412
    // Predicated region
    $region26: #{vae_forward.1} parent=1 // pred_check
      _
    $region27: #{vae_forward.1} parent=1 // pred_check_branch
      %789 = sbr.rel (0) target = $region29
    $region28: #{vae_forward.1} parent=1 // pred_region
      _
    $region29: #{vae_forward.1} parent=1 // pred_fallthru
      _
    // Predicated region
    $region30: #{vae_forward.1} parent=1 // pred_check
      _
    $region31: #{vae_forward.1} parent=1 // pred_check_branch
      %791 = sbr.rel (0) target = $region33
    $region32: #{vae_forward.1} parent=1 // pred_region
      _
    $region33: #{vae_forward.1} parent=1 // pred_fallthru
      _
    %792 = vsyncpa [#allocation3], 1
    %793 = vsyncpa [#allocation5], 1

</llo_original>
